<compile_context>
chip_gen: v5e
topology: v5e:2x2
jax: 0.10.0
libtpu: 0.0.40
codegen_flags: <defaults>
</compile_context>

<pallas_src>
import functools

import jax
import jax.numpy as jnp
from jax.experimental import pallas as pl
from jax.experimental.pallas import tpu as pltpu

_LANE = 128
_SUBLANE = 16                      # bf16-friendly row granularity
_VMEM_BUDGET = 24 * 1024 * 1024    # working-set target (fits v5e/v6e/v7x)
_VMEM_LIMIT = 48 * 1024 * 1024     # scoped-VMEM cap passed to the compiler


def _round_up(n, m):
    return ((n + m - 1) // m) * m


def _pad_dim(d):
    # Lane-dense padding.  Above 128 we target 256 multiples: v6e/v7x MXUs are
    # 256x256 (on v5e the extra padding is harmless).
    return _LANE if d <= _LANE else _round_up(d, 2 * _LANE)


def _vmem_working_set(tb, dp, hp, state_bytes=4):
    # Conservative estimate of the per-step VMEM footprint (RK4 worst case):
    # double-buffered state in/out tiles + live f32 intermediates + resident
    # (single-buffered) weights.
    io = 2 * 2 * tb * dp * state_bytes
    interm = tb * (5 * dp + hp) * 4
    weights = 2 * dp * hp * 2 + 6 * hp * 4 + dp * 4
    return io + interm + weights


def _pick_tb(rows, dp, hp, block_b):
    rows = _round_up(max(rows, 1), _SUBLANE)
    # <= ceil(rows/2) so the grid has >= 2 tiles whenever possible (v7x megacore).
    half = _round_up(-(-rows // 2), _SUBLANE)
    tb = max(_SUBLANE, min(block_b, half))
    while tb > _SUBLANE and _vmem_working_set(tb, dp, hp) > _VMEM_BUDGET:
        tb = max(_SUBLANE, _round_up(tb // 2, _SUBLANE))
    return tb


# ----------------------------------------------------------------------------
# Kernels
# ----------------------------------------------------------------------------
def _node_df_kernel(x_ref, w1_ref, b1eff_ref, w2_ref, b2_ref, o_ref):
    # df(t, x) with t already folded into b1eff = b1 + t*wt (done host-side).
    # x tile pipelined over the batch grid; weights VMEM-resident.
    x = x_ref[...].astype(jnp.bfloat16)
    h = jnp.dot(x, w1_ref[...], preferred_element_type=jnp.float32)
    h = jnp.tanh(h + b1eff_ref[...])
    o = jnp.dot(h.astype(jnp.bfloat16), w2_ref[...],
                preferred_element_type=jnp.float32)
    o_ref[...] = (o + b2_ref[...]).astype(o_ref.dtype)


def _node_rk4_kernel(dt_ref, x_ref, w1_ref, beff_ref, w2_ref, b2_ref, y_ref):
    # One full RK4 step per batch tile: 4 fused df evaluations, state read once
    # and written once.  beff_ref holds the 4 stage-effective biases
    # b1 + t_stage * wt (precomputed host-side).
    dt = dt_ref[0, 0]
    x0 = x_ref[...].astype(jnp.float32)
    w1 = w1_ref[...]
    w2 = w2_ref[...]
    b2 = b2_ref[...]

    def df(xin, stage):
        h = jnp.dot(xin.astype(jnp.bfloat16), w1,
                    preferred_element_type=jnp.float32)
        h = jnp.tanh(h + beff_ref[stage:stage + 1, :])
        return jnp.dot(h.astype(jnp.bfloat16), w2,
                       preferred_element_type=jnp.float32) + b2

    k1 = df(x0, 0)
    k2 = df(x0 + (0.5 * dt) * k1, 1)
    k3 = df(x0 + (0.5 * dt) * k2, 2)
    k4 = df(x0 + dt * k3, 3)
    y_ref[...] = (x0 + (dt / 6.0) * (k1 + 2.0 * k2 + 2.0 * k3 + k4)
                  ).astype(y_ref.dtype)


# ----------------------------------------------------------------------------
# Jitted pallas_call wrappers (operate on the persistent padded layout)
# ----------------------------------------------------------------------------
def _resident(shape):
    # Constant-index (VMEM-resident) operand; single-buffered.
    return pl.BlockSpec(shape, lambda i: (0, 0), pipeline_mode=pl.Buffered(1))


def _compiler_params():
    return pltpu.CompilerParams(
        dimension_semantics=("parallel",),      # batch grid -> megacore on v7x
        vmem_limit_bytes=_VMEM_LIMIT,
    )


@functools.partial(jax.jit, static_argnames=("tb",))
def _df_padded_jit(t, xp, w1p, b1p, wtp, w2p, b2p, *, tb):
    bp, dp = xp.shape
    hp = w1p.shape[1]
    b1eff = b1p + jnp.asarray(t, jnp.float32) * wtp        # (1, Hp) host-side fold
    return pl.pallas_call(
        _node_df_kernel,
        out_shape=jax.ShapeDtypeStruct((bp, dp), xp.dtype),
        grid=(bp // tb,),
        in_specs=[
            pl.BlockSpec((tb, dp), lambda i: (i, 0)),       # x tile (pipelined)
            _resident((dp, hp)),                            # W1
            _resident((1, hp)),                             # b1 + t*wt
            _resident((hp, dp)),                            # W2
            _resident((1, dp)),                             # b2
        ],
        out_specs=pl.BlockSpec((tb, dp), lambda i: (i, 0)),
        compiler_params=_compiler_params(),
    )(xp, w1p, b1eff, w2p, b2p)


@functools.partial(jax.jit, static_argnames=("tb",))
def _rk4_step_jit(t, dt, xp, w1p, b1p, wtp, w2p, b2p, *, tb):
    bp, dp = xp.shape
    hp = w1p.shape[1]
    t = jnp.asarray(t, jnp.float32)
    dt = jnp.asarray(dt, jnp.float32)
    stage_t = t + dt * jnp.array([0.0, 0.5, 0.5, 1.0], jnp.float32)
    beff = b1p + stage_t[:, None] * wtp                     # (4, Hp)
    dt_arr = dt.reshape(1, 1)
    return pl.pallas_call(
        _node_rk4_kernel,
        out_shape=jax.ShapeDtypeStruct((bp, dp), xp.dtype),
        grid=(bp // tb,),
        in_specs=[
            pl.BlockSpec(memory_space=pltpu.SMEM),          # dt scalar
            pl.BlockSpec((tb, dp), lambda i: (i, 0)),       # state tile
            _resident((dp, hp)),                            # W1
            _resident((4, hp)),                             # stage biases
            _resident((hp, dp)),                            # W2
            _resident((1, dp)),                             # b2
        ],
        out_specs=pl.BlockSpec((tb, dp), lambda i: (i, 0)),
        compiler_params=_compiler_params(),
    )(dt_arr, xp, w1p, beff, w2p, b2p)


# ----------------------------------------------------------------------------
# Derivative module (synthetic df) with a padded-state performance API
# ----------------------------------------------------------------------------
class NodeDFPallas:
    """df(t, x) = tanh(x @ W1 + b1 + t*wt) @ W2 + b2 with Pallas TPU kernels.

    Performance path: pad the ODE state once (`pad_state`), integrate with
    `df_padded` / `rk4_step_padded` in the padded layout, slice once at the end
    (`unpad_state`).  `__call__(t, x)` keeps the PyTorch df(t, x) signature
    (it pads/slices per call, so prefer the padded API inside a solver loop).
    """

    def __init__(self, w1, b1, wt, w2, b2, *, block_b=4096):
        D, H = w1.shape
        self.D, self.H = D, H
        self.block_b = int(block_b)
        Dp, Hp = _pad_dim(D), _pad_dim(H)
        self.Dp, self.Hp = Dp, Hp

        # Resident-weight guard: v7x has only 64 MiB physical VMEM per core.
        if 2 * Dp * Hp * 2 > 12 * 1024 * 1024:
            # TODO(synk): chunk W1/W2 over a K/N grid axis with an f32 accumulator
            # (pl.when init/finalize) instead of keeping both fully VMEM-resident.
            raise NotImplementedError("W1/W2 too large to stay VMEM-resident")

        self.w1p = jnp.zeros((Dp, Hp), jnp.bfloat16).at[:D, :H].set(
            jnp.asarray(w1, jnp.bfloat16))
        self.w2p = jnp.zeros((Hp, Dp), jnp.bfloat16).at[:H, :D].set(
            jnp.asarray(w2, jnp.bfloat16))
        self.b1p = jnp.zeros((1, Hp), jnp.float32).at[:, :H].set(
            jnp.asarray(b1, jnp.float32).reshape(1, H))
        self.wtp = jnp.zeros((1, Hp), jnp.float32).at[:, :H].set(
            jnp.asarray(wt, jnp.float32).reshape(1, H))
        self.b2p = jnp.zeros((1, Dp), jnp.float32).at[:, :D].set(
            jnp.asarray(b2, jnp.float32).reshape(1, D))

    # -- padded-state API (pad once per solve / slice once at the end) --------
    def pad_state(self, x):
        B, D = x.shape
        assert D == self.D
        tb = _pick_tb(B, self.Dp, self.Hp, self.block_b)
        Bp = _round_up(_round_up(B, _SUBLANE), tb)
        # TODO(synk): a bf16 padded state would cut HBM traffic further if the
        # ODE solver tolerates the reduced state precision.
        return jnp.zeros((Bp, self.Dp), x.dtype).at[:B, :D].set(x)

    def unpad_state(self, xp, B):
        return xp[:B, :self.D]

    def _tb_for_padded(self, Bp):
        tb = _pick_tb(Bp, self.Dp, self.Hp, self.block_b)
        tb = min(tb, Bp)
        while Bp % tb:
            tb -= _SUBLANE
        return tb

    def df_padded(self, t, xp):
        tb = self._tb_for_padded(xp.shape[0])
        return _df_padded_jit(t, xp, self.w1p, self.b1p, self.wtp,
                              self.w2p, self.b2p, tb=tb)

    def rk4_step_padded(self, t, dt, xp):
        tb = self._tb_for_padded(xp.shape[0])
        return _rk4_step_jit(t, dt, xp, self.w1p, self.b1p, self.wtp,
                             self.w2p, self.b2p, tb=tb)

    # -- PyTorch-compatible df(t, x) ------------------------------------------
    def __call__(self, t, x):
        B = x.shape[0]
        xp = self.pad_state(x)
        return self.unpad_state(self.df_padded(t, xp), B)


# ----------------------------------------------------------------------------
# NODE wrapper (matches the PyTorch module's forward semantics)
# ----------------------------------------------------------------------------
class NODE:
    """forward(t, x) -> df(t, x); nfe is Python host-side state like PyTorch."""

    def __init__(self, df=None, **kwargs):
        self.__dict__.update(kwargs)
        self.df = df
        self.nfe = 0

    def forward(self, t, x):
        self.nfe += 1
        return self.df(t, x)

    __call__ = forward


# ----------------------------------------------------------------------------
# References
# ----------------------------------------------------------------------------
def reference_df(t, x, params):
    w1, b1, wt, w2, b2 = params
    h = jnp.tanh(jnp.dot(x, w1) + b1 + jnp.asarray(t, jnp.float32) * wt)
    return jnp.dot(h, w2) + b2


def reference_rk4(t0, dt, n_steps, x, params):
    x = jnp.asarray(x, jnp.float32)
    t = jnp.asarray(t0, jnp.float32)
    for _ in range(n_steps):
        k1 = reference_df(t, x, params)
        k2 = reference_df(t + 0.5 * dt, x + 0.5 * dt * k1, params)
        k3 = reference_df(t + 0.5 * dt, x + 0.5 * dt * k2, params)
        k4 = reference_df(t + dt, x + dt * k3, params)
        x = x + (dt / 6.0) * (k1 + 2.0 * k2 + 2.0 * k3 + k4)
        t = t + dt
    return x


if __name__ == "__main__":
    key = jax.random.PRNGKey(0)
    kx, k1, k2, k3, k4, k5 = jax.random.split(key, 6)

    B, D, H = 8, 32, 64
    x = jax.random.normal(kx, (B, D), jnp.float32)
    t = jnp.float32(0.5)

    w1 = jax.random.normal(k1, (D, H), jnp.float32) / jnp.sqrt(D)
    b1 = jax.random.normal(k2, (1, H), jnp.float32) * 0.1
    wt = jax.random.normal(k3, (1, H), jnp.float32) * 0.1
    w2 = jax.random.normal(k4, (H, D), jnp.float32) / jnp.sqrt(H)
    b2 = jax.random.normal(k5, (1, D), jnp.float32) * 0.1
    params = (w1, b1, wt, w2, b2)

    df_mod = NodeDFPallas(w1, b1, wt, w2, b2)
    node = NODE(df=df_mod)

    # 1) PyTorch-equivalent NODE.forward: a single df(t, x) evaluation.
    out = jax.block_until_ready(node(t, x))
    ref = reference_df(t, x, params)
    assert out.shape == x.shape and out.dtype == x.dtype
    # bf16 MXU operands (f32 accumulation) -> loosened tolerance vs f32 reference.
    assert jnp.allclose(out, ref, atol=2e-2, rtol=2e-2)
    assert node.nfe == 1

    # 2) Padded-state solve: pad once, fused RK4 steps (4 df evals per launch),
    #    slice once at the end.
    n_steps = 4
    dt = jnp.float32(0.1)
    xp = df_mod.pad_state(x)
    tt = t
    for _ in range(n_steps):
        xp = df_mod.rk4_step_padded(tt, dt, xp)
        tt = tt + dt
    y = jax.block_until_ready(df_mod.unpad_state(xp, B))
    y_ref = reference_rk4(t, dt, n_steps, x, params)
    assert y.shape == x.shape
    assert jnp.allclose(y, y_ref, atol=5e-2, rtol=5e-2)

    print("KERNEL_OK")
</pallas_src>

<mosaic_0001>
module attributes {stable_mosaic.version = 11 : i64} {
  func.func @_node_df_kernel(%arg0: i32, %arg1: memref<16x128xf32, #tpu.memory_space<vmem>>, %arg2: memref<128x128xbf16, #tpu.memory_space<vmem>>, %arg3: memref<1x128xf32, #tpu.memory_space<vmem>>, %arg4: memref<128x128xbf16, #tpu.memory_space<vmem>>, %arg5: memref<1x128xf32, #tpu.memory_space<vmem>>, %arg6: memref<16x128xf32, #tpu.memory_space<vmem>>) attributes {dimension_semantics = [#tpu.dimension_semantics<parallel>], iteration_bounds = array<i64: 1>, scalar_prefetch = 0 : i64, scratch_operands = 0 : i64, tpu.core_type = #tpu.core_type<tc>, window_params = [{transform_indices = @transform_0, window_bounds = array<i64: 16, 128>}, {pipeline_mode = #tpu.pipeline_mode<synchronous>, transform_indices = @transform_1, window_bounds = array<i64: 128, 128>}, {pipeline_mode = #tpu.pipeline_mode<synchronous>, transform_indices = @transform_2, window_bounds = array<i64: 1, 128>}, {pipeline_mode = #tpu.pipeline_mode<synchronous>, transform_indices = @transform_3, window_bounds = array<i64: 128, 128>}, {pipeline_mode = #tpu.pipeline_mode<synchronous>, transform_indices = @transform_4, window_bounds = array<i64: 1, 128>}, {transform_indices = @transform_5, window_bounds = array<i64: 16, 128>}]} {
    %c0 = arith.constant 0 : index
    %c0_0 = arith.constant 0 : index
    %0 = vector.load %arg1[%c0, %c0_0] : memref<16x128xf32, #tpu.memory_space<vmem>>, vector<16x128xf32>
    %1 = arith.truncf %0 : vector<16x128xf32> to vector<16x128xbf16>
    %c0_1 = arith.constant 0 : index
    %c0_2 = arith.constant 0 : index
    %2 = vector.load %arg2[%c0_1, %c0_2] : memref<128x128xbf16, #tpu.memory_space<vmem>>, vector<128x128xbf16>
    %cst = arith.constant dense<0.000000e+00> : vector<16x128xf32>
    %3 = tpu.matmul %1, %2, %cst {dimension_numbers = #tpu.dot_dimension_numbers<[1], [0], [0], [1], [0, 0, 1, 1], [], []>} : vector<16x128xbf16>, vector<128x128xbf16>, vector<16x128xf32> -> vector<16x128xf32>
    %c0_3 = arith.constant 0 : index
    %c0_4 = arith.constant 0 : index
    %4 = vector.load %arg3[%c0_3, %c0_4] : memref<1x128xf32, #tpu.memory_space<vmem>>, vector<1x128xf32>
    %5 = vector.broadcast %4 : vector<1x128xf32> to vector<16x128xf32>
    %6 = arith.addf %3, %5 : vector<16x128xf32>
    %7 = math.tanh %6 : vector<16x128xf32>
    %8 = arith.truncf %7 : vector<16x128xf32> to vector<16x128xbf16>
    %c0_5 = arith.constant 0 : index
    %c0_6 = arith.constant 0 : index
    %9 = vector.load %arg4[%c0_5, %c0_6] : memref<128x128xbf16, #tpu.memory_space<vmem>>, vector<128x128xbf16>
    %cst_7 = arith.constant dense<0.000000e+00> : vector<16x128xf32>
    %10 = tpu.matmul %8, %9, %cst_7 {dimension_numbers = #tpu.dot_dimension_numbers<[1], [0], [0], [1], [0, 0, 1, 1], [], []>} : vector<16x128xbf16>, vector<128x128xbf16>, vector<16x128xf32> -> vector<16x128xf32>
    %c0_8 = arith.constant 0 : index
    %c0_9 = arith.constant 0 : index
    %11 = vector.load %arg5[%c0_8, %c0_9] : memref<1x128xf32, #tpu.memory_space<vmem>>, vector<1x128xf32>
    %12 = vector.broadcast %11 : vector<1x128xf32> to vector<16x128xf32>
    %13 = arith.addf %10, %12 : vector<16x128xf32>
    %c0_10 = arith.constant 0 : index
    %c0_11 = arith.constant 0 : index
    %14 = vector.load %arg6[%c0_10, %c0_11] : memref<16x128xf32, #tpu.memory_space<vmem>>, vector<16x128xf32>
    tpu.vector_store %arg6[%c0_10, %c0_11], %13 {strides = array<i32>} : memref<16x128xf32, #tpu.memory_space<vmem>>, vector<16x128xf32>,
    return
  }
  func.func @transform_0(%arg0: i32) -> (i32, i32) {
    %c0_i32 = arith.constant 0 : i32
    %c0_i32_0 = arith.constant 0 : i32
    return %arg0, %c0_i32 : i32, i32
  }
  func.func @transform_1(%arg0: i32) -> (i32, i32) {
    %c0_i32 = arith.constant 0 : i32
    %c0_i32_0 = arith.constant 0 : i32
    %c0_i32_1 = arith.constant 0 : i32
    return %c0_i32, %c0_i32_0 : i32, i32
  }
  func.func @transform_2(%arg0: i32) -> (i32, i32) {
    %c0_i32 = arith.constant 0 : i32
    %c0_i32_0 = arith.constant 0 : i32
    %c0_i32_1 = arith.constant 0 : i32
    return %c0_i32, %c0_i32_0 : i32, i32
  }
  func.func @transform_3(%arg0: i32) -> (i32, i32) {
    %c0_i32 = arith.constant 0 : i32
    %c0_i32_0 = arith.constant 0 : i32
    %c0_i32_1 = arith.constant 0 : i32
    return %c0_i32, %c0_i32_0 : i32, i32
  }
  func.func @transform_4(%arg0: i32) -> (i32, i32) {
    %c0_i32 = arith.constant 0 : i32
    %c0_i32_0 = arith.constant 0 : i32
    %c0_i32_1 = arith.constant 0 : i32
    return %c0_i32, %c0_i32_0 : i32, i32
  }
  func.func @transform_5(%arg0: i32) -> (i32, i32) {
    %c0_i32 = arith.constant 0 : i32
    %c0_i32_0 = arith.constant 0 : i32
    return %arg0, %c0_i32 : i32, i32
  }
}

</mosaic_0001>

<llo_original>
// kernel: _df_padded_jit.1
$region0: #{_df_padded_jit.1}
  #allocation0 [shape = 'u32[]', space=smem, size = 0x4, offset = 0x4, fixed_abs, tag = 'smem constant byte address 0x4 - core index']
  #allocation1 [shape = 'u32[72,128]{1,0:T(1,128)}', space=vmem, size = 0x9000, scoped, tag = 'internal scratch']
  %s0 = inlined_call_operand.hbm [shape: f32[16,128], index: 0, kind: input, shape index: {}]
  %s1 = inlined_call_operand.hbm [shape: bf16[128,128], index: 1, kind: input, shape index: {}]
  %s2 = inlined_call_operand.vmem [shape: f32[1,128], index: 2, kind: input, shape index: {}]
  %s3 = inlined_call_operand.hbm [shape: bf16[128,128], index: 3, kind: input, shape index: {}]
  %s4 = inlined_call_operand.vmem [shape: f32[1,128], index: 4, kind: input, shape index: {}]
  %s5 = inlined_call_operand.hbm [shape: f32[16,128], index: 5, kind: output, shape index: {}]
  %s6 = sld [smem:[#allocation0]]
  $region42: #{_df_padded_jit.1} parent=0
    _
  %s8 = ssub.s32 1, %s6
  %s9 = scalar_select 0, %s8, %s6
  $region1: #{_df_padded_jit.1} parent=0
    #allocation2 [shape = 'u8[8192]{0}', space=vmem, size = 0x2000, scoped, tag = 'input window, operand 0, single buffered']
    #allocation3 [shape = 's32[1]{0}', space=sflag, size = 0x4, scoped, tag = 'scoped memory for _df_padded_jit.1']
    #allocation4 [shape = 's32[1]{0}', space=sflag, size = 0x4, scoped, tag = 'scoped memory for _df_padded_jit.1']
    #allocation5 [shape = 'u8[32768]{0}', space=vmem, size = 0x8000, scoped, tag = 'input window, operand 1, single buffered']
    #allocation6 [shape = 's32[1]{0}', space=sflag, size = 0x4, scoped, tag = 'scoped memory for _df_padded_jit.1']
    #allocation7 [shape = 'u8[32768]{0}', space=vmem, size = 0x8000, scoped, tag = 'input window, operand 3, single buffered']
    #allocation8 [shape = 'u8[8192]{0}', space=vmem, size = 0x2000, scoped, tag = 'output window, operand 0, single buffered']
    %10 = vsyncpa [#allocation3], 0
    %11 = vsyncpa [#allocation6], 0
    %12 = vsyncpa [#allocation4], 0
    // Predicated region
    $region2: #{_df_padded_jit.1} parent=1 // pred_check
      _
    $region3: #{_df_padded_jit.1} parent=1 // pred_check_branch
      %14 = sbr.rel (0) target = $region5
    $region4: #{_df_padded_jit.1} parent=1 // pred_region
      %16 = vsyncadd [#allocation3], 0
      %s17 = sshll.u32 %s0, 4
      %s18 = int_to_ptr.hbm [resolvable:$true] %s17
      %s19 = sshll.u32 [#allocation2], 4
      %s20 = int_to_ptr.vmem [resolvable:$true] %s19
      %25 = dma.hbm_to_vmem [thread:$0]  %s18, 256, %s20, [#allocation3], 128, 128, 8
    $region5: #{_df_padded_jit.1} parent=1 // pred_fallthru
      _
    // Predicated region
    $region6: #{_df_padded_jit.1} parent=1 // pred_check
      _
    $region7: #{_df_padded_jit.1} parent=1 // pred_check_branch
      %27 = sbr.rel (0) target = $region9
    $region8: #{_df_padded_jit.1} parent=1 // pred_region
      %29 = vsyncadd [#allocation6], 0
      %s30 = sshll.u32 %s1, 4
      %s31 = int_to_ptr.hbm [resolvable:$true] %s30
      %s32 = sshll.u32 [#allocation5], 4
      %s33 = int_to_ptr.vmem [resolvable:$true] %s32
      %38 = dma.hbm_to_vmem [thread:$0]  %s31, 1024, %s33, [#allocation6], 64, 64, 4
    $region9: #{_df_padded_jit.1} parent=1 // pred_fallthru
      _
    // Predicated region
    $region10: #{_df_padded_jit.1} parent=1 // pred_check
      _
    $region11: #{_df_padded_jit.1} parent=1 // pred_check_branch
      %40 = sbr.rel (0) target = $region13
    $region12: #{_df_padded_jit.1} parent=1 // pred_region
      _
    $region13: #{_df_padded_jit.1} parent=1 // pred_fallthru
      _
    // Predicated region
    $region14: #{_df_padded_jit.1} parent=1 // pred_check
      _
    $region15: #{_df_padded_jit.1} parent=1 // pred_check_branch
      %42 = sbr.rel (0) target = $region17
    $region16: #{_df_padded_jit.1} parent=1 // pred_region
      %44 = vsyncadd [#allocation6], 0
      %s45 = sshll.u32 %s3, 4
      %s46 = int_to_ptr.hbm [resolvable:$true] %s45
      %s47 = sshll.u32 [#allocation7], 4
      %s48 = int_to_ptr.vmem [resolvable:$true] %s47
      %53 = dma.hbm_to_vmem [thread:$0]  %s46, 1024, %s48, [#allocation6], 64, 64, 4
    $region17: #{_df_padded_jit.1} parent=1 // pred_fallthru
      _
    // Predicated region
    $region18: #{_df_padded_jit.1} parent=1 // pred_check
      _
    $region19: #{_df_padded_jit.1} parent=1 // pred_check_branch
      %55 = sbr.rel (0) target = $region21
    $region20: #{_df_padded_jit.1} parent=1 // pred_region
      _
    $region21: #{_df_padded_jit.1} parent=1 // pred_fallthru
      _
    // Predicated region
    $region22: #{_df_padded_jit.1} parent=1 // pred_check
      _
    $region23: #{_df_padded_jit.1} parent=1 // pred_check_branch
      %57 = sbr.rel (0) target = $region25
    $region24: #{_df_padded_jit.1} parent=1 // pred_region
      %59 = dma.done [#allocation3], 256
    $region25: #{_df_padded_jit.1} parent=1 // pred_fallthru
      _
    // Predicated region
    $region26: #{_df_padded_jit.1} parent=1 // pred_check
      _
    $region27: #{_df_padded_jit.1} parent=1 // pred_check_branch
      %61 = sbr.rel (0) target = $region29
    $region28: #{_df_padded_jit.1} parent=1 // pred_region
      %63 = dma.done [#allocation6], 1024
    $region29: #{_df_padded_jit.1} parent=1 // pred_fallthru
      _
    // Predicated region
    $region30: #{_df_padded_jit.1} parent=1 // pred_check
      _
    $region31: #{_df_padded_jit.1} parent=1 // pred_check_branch
      %65 = sbr.rel (0) target = $region33
    $region32: #{_df_padded_jit.1} parent=1 // pred_region
      %67 = dma.done [#allocation6], 1024
    $region33: #{_df_padded_jit.1} parent=1 // pred_fallthru
      _
    %v68 = vld [vmem:[#allocation2] sm:$0xff]
    %v69 = vld [vmem:[#allocation2 + $0x8] sm:$0xff]
    %v70 = vpack.c.bf16 %v69, %v68
    %v71 = vld [vmem:[#allocation5] sm:$0xf]
    %v72 = vld [vmem:[#allocation5 + $0x4] sm:$0xf]
    %v73 = vld [vmem:[#allocation5 + $0x8] sm:$0xf]
    %v74 = vld [vmem:[#allocation5 + $0xc] sm:$0xf]
    %v75 = vld [vmem:[#allocation5 + $0x10] sm:$0xf]
    %v76 = vld [vmem:[#allocation5 + $0x14] sm:$0xf]
    %v77 = vld [vmem:[#allocation5 + $0x18] sm:$0xf]
    %v78 = vld [vmem:[#allocation5 + $0x1c] sm:$0xf]
    %v79 = vld [vmem:[#allocation5 + $0x20] sm:$0xf]
    %v80 = vld [vmem:[#allocation5 + $0x24] sm:$0xf]
    %v81 = vld [vmem:[#allocation5 + $0x28] sm:$0xf]
    %v82 = vld [vmem:[#allocation5 + $0x2c] sm:$0xf]
    %v83 = vld [vmem:[#allocation5 + $0x30] sm:$0xf]
    %v84 = vld [vmem:[#allocation5 + $0x34] sm:$0xf]
    %v85 = vld [vmem:[#allocation5 + $0x38] sm:$0xf]
    %v86 = vld [vmem:[#allocation5 + $0x3c] sm:$0xf]
    %v87 = vld [vmem:[%s2] sm:$0x1]
    %v89 = vperm.slane %v87, 0
    %v107 = vunpack.c.l.b16 %v71
    %v108 = vunpack.c.l.b16 %v72
    %v109 = vunpack.c.l.b16 %v73
    %v110 = vunpack.c.l.b16 %v74
    %v111 = vunpack.c.l.b16 %v75
    %v112 = vunpack.c.l.b16 %v76
    %v113 = vunpack.c.l.b16 %v77
    %v114 = vunpack.c.l.b16 %v78
    %v115 = vunpack.c.l.b16 %v79
    %v116 = vunpack.c.l.b16 %v80
    %v117 = vunpack.c.l.b16 %v81
    %v118 = vunpack.c.l.b16 %v82
    %v119 = vunpack.c.l.b16 %v83
    %v120 = vunpack.c.l.b16 %v84
    %v121 = vunpack.c.l.b16 %v85
    %v122 = vunpack.c.l.b16 %v86
    %v123 = vpack.c.b16 %v108, %v107
    %v124 = vpack.c.b16 %v110, %v109
    %v125 = vpack.c.b16 %v112, %v111
    %v126 = vpack.c.b16 %v114, %v113
    %v127 = vpack.c.b16 %v116, %v115
    %v128 = vpack.c.b16 %v118, %v117
    %v129 = vpack.c.b16 %v120, %v119
    %v130 = vpack.c.b16 %v122, %v121
    %139 = vmatpush.bf16.msra.mxu0 %v130
    %140 = vmatpush.bf16.msra.mxu0 %v129
    %141 = vmatpush.bf16.msra.mxu0 %v128
    %142 = vmatpush.bf16.msra.mxu0 %v127
    %143 = vmatpush.bf16.msra.mxu0 %v126
    %144 = vmatpush.bf16.msra.mxu0 %v125
    %145 = vmatpush.bf16.msra.mxu0 %v124
    %146 = vmatpush.bf16.msra.mxu0 %v123
    %147 = vmatmul.bf16.gmra.mxu0 %v70
    %v148 = vpop.f32.mrf.mxu0
    %v149 = vadd.f32 %v89, %v148
    %v150 = vpop.f32.mrf.mxu0
    %v151 = vadd.f32 %v89, %v150
    %152 = vdwg.mxu0
    %v153 = vtanh.pop %v149
    %v154 = vtanh.pop %v151
    %v155 = vpack.c.bf16 %v154, %v153
    %v156 = vld [vmem:[#allocation7] sm:$0xf]
    %v157 = vld [vmem:[#allocation7 + $0x4] sm:$0xf]
    %v158 = vld [vmem:[#allocation7 + $0x8] sm:$0xf]
    %v159 = vld [vmem:[#allocation7 + $0xc] sm:$0xf]
    %v160 = vld [vmem:[#allocation7 + $0x10] sm:$0xf]
    %v161 = vld [vmem:[#allocation7 + $0x14] sm:$0xf]
    %v162 = vld [vmem:[#allocation7 + $0x18] sm:$0xf]
    %v163 = vld [vmem:[#allocation7 + $0x1c] sm:$0xf]
    %v164 = vld [vmem:[#allocation7 + $0x20] sm:$0xf]
    %v165 = vld [vmem:[#allocation7 + $0x24] sm:$0xf]
    %v166 = vld [vmem:[#allocation7 + $0x28] sm:$0xf]
    %v167 = vld [vmem:[#allocation7 + $0x2c] sm:$0xf]
    %v168 = vld [vmem:[#allocation7 + $0x30] sm:$0xf]
    %v169 = vld [vmem:[#allocation7 + $0x34] sm:$0xf]
    %v170 = vld [vmem:[#allocation7 + $0x38] sm:$0xf]
    %v171 = vld [vmem:[#allocation7 + $0x3c] sm:$0xf]
    %v172 = vld [vmem:[%s4] sm:$0x1]
    %v174 = vperm.slane %v172, 0
    %v192 = vunpack.c.l.b16 %v156
    %v193 = vunpack.c.l.b16 %v157
    %v194 = vunpack.c.l.b16 %v158
    %v195 = vunpack.c.l.b16 %v159
    %v196 = vunpack.c.l.b16 %v160
    %v197 = vunpack.c.l.b16 %v161
    %v198 = vunpack.c.l.b16 %v162
    %v199 = vunpack.c.l.b16 %v163
    %v200 = vunpack.c.l.b16 %v164
    %v201 = vunpack.c.l.b16 %v165
    %v202 = vunpack.c.l.b16 %v166
    %v203 = vunpack.c.l.b16 %v167
    %v204 = vunpack.c.l.b16 %v168
    %v205 = vunpack.c.l.b16 %v169
    %v206 = vunpack.c.l.b16 %v170
    %v207 = vunpack.c.l.b16 %v171
    %v208 = vpack.c.b16 %v193, %v192
    %v209 = vpack.c.b16 %v195, %v194
    %v210 = vpack.c.b16 %v197, %v196
    %v211 = vpack.c.b16 %v199, %v198
    %v212 = vpack.c.b16 %v201, %v200
    %v213 = vpack.c.b16 %v203, %v202
    %v214 = vpack.c.b16 %v205, %v204
    %v215 = vpack.c.b16 %v207, %v206
    %224 = vmatpush.bf16.msra.mxu0 %v215
    %225 = vmatpush.bf16.msra.mxu0 %v214
    %226 = vmatpush.bf16.msra.mxu0 %v213
    %227 = vmatpush.bf16.msra.mxu0 %v212
    %228 = vmatpush.bf16.msra.mxu0 %v211
    %229 = vmatpush.bf16.msra.mxu0 %v210
    %230 = vmatpush.bf16.msra.mxu0 %v209
    %231 = vmatpush.bf16.msra.mxu0 %v208
    %232 = vmatmul.bf16.gmra.mxu0 %v155
    %v233 = vpop.f32.mrf.mxu0
    %v234 = vadd.f32 %v174, %v233
    %v235 = vpop.f32.mrf.mxu0
    %v236 = vadd.f32 %v174, %v235
    %237 = vdwg.mxu0
    %238 = vst [vmem:[#allocation8] sm:$0xff] %v234
    %239 = vst [vmem:[#allocation8 + $0x8] sm:$0xff] %v236
    // Predicated region
    $region34: #{_df_padded_jit.1} parent=1 // pred_check
      _
    $region35: #{_df_padded_jit.1} parent=1 // pred_check_branch
      %241 = sbr.rel (0) target = $region37
    $region36: #{_df_padded_jit.1} parent=1 // pred_region
      %243 = vsyncadd [#allocation4], 0
      %s244 = sshll.u32 [#allocation8], 4
      %s245 = int_to_ptr.vmem [resolvable:$true] %s244
      %s246 = sshll.u32 %s5, 4
      %s247 = int_to_ptr.hbm [resolvable:$true] %s246
      %252 = dma.vmem_to_hbm [thread:$0]  %s245, 256, %s247, [#allocation4], 128, 128, 8
    $region37: #{_df_padded_jit.1} parent=1 // pred_fallthru
      _
    // Predicated region
    $region38: #{_df_padded_jit.1} parent=1 // pred_check
      _
    $region39: #{_df_padded_jit.1} parent=1 // pred_check_branch
      %254 = sbr.rel (0) target = $region41
    $region40: #{_df_padded_jit.1} parent=1 // pred_region
      %256 = dma.done [#allocation4], 256
    $region41: #{_df_padded_jit.1} parent=1 // pred_fallthru
      _
    %257 = vsyncpa [#allocation3], 1
    %258 = vsyncpa [#allocation6], 1
    %259 = vsyncpa [#allocation4], 1

</llo_original>
